<compile_context>
chip_gen: v7x
topology: tpu7x:2x2x1
jax: 0.10.0
libtpu: 0.0.40
codegen_flags: <defaults>
</compile_context>

<pallas_src>
import functools
import math

import jax
import jax.numpy as jnp
from jax import lax
from jax.experimental import pallas as pl
from jax.experimental.pallas import tpu as pltpu


# ---------------------------------------------------------------------------
# Kernel bodies
# ---------------------------------------------------------------------------
def _logtrans_compute(q, k, m, attn_ref, *, scale, transposed):
    """q:(TB,Lq,D)  k:(TB,nk,D)  m: packed-bit int32 (TB,1,Lq)/(TB,Lq,1) or None.

    Writes attn into attn_ref with shape (TB,nk,Lq) if transposed else (TB,Lq,nk).
    """
    if transposed:
        # Lane-dense: Lq on the 128-lane axis; softmax over the tiny nk axis.
        scores = jnp.einsum(
            "bkd,bqd->bkq", k, q, preferred_element_type=jnp.float32
        )
        key_axis = 1
    else:
        scores = jnp.einsum(
            "bqd,bkd->bqk", q, k, preferred_element_type=jnp.float32
        )
        key_axis = 2
    scores = scores * jnp.float32(scale)

    if m is not None:
        # Unpack the per-row bit mask on the VPU (plenty of slack: mem-bound).
        kidx = lax.broadcasted_iota(jnp.int32, scores.shape, key_axis)
        bits = jnp.bitwise_and(jnp.right_shift(m, kidx), 1)
        # masked_fill_ semantics (not an additive bias).
        scores = jnp.where(bits != 0, jnp.float32(-1.0e9), scores)

    mx = jnp.max(scores, axis=key_axis, keepdims=True)
    e = jnp.exp(scores - mx)
    denom = jnp.sum(e, axis=key_axis, keepdims=True)
    attn = e * pl.reciprocal(denom, approx=True)  # divide on the EUP slot
    attn_ref[...] = attn.astype(attn_ref.dtype)


def _logtrans_kernel_masked(q_ref, k_ref, m_ref, attn_ref, *, scale, transposed):
    _logtrans_compute(q_ref[...], k_ref[...], m_ref[...], attn_ref,
                      scale=scale, transposed=transposed)


def _logtrans_kernel_nomask(q_ref, k_ref, attn_ref, *, scale, transposed):
    _logtrans_compute(q_ref[...], k_ref[...], None, attn_ref,
                      scale=scale, transposed=transposed)


# ---------------------------------------------------------------------------
# VMEM budgeting / tiling helpers
# ---------------------------------------------------------------------------
def _padded_vmem_bytes(rows, cols, dtype):
    """VMEM bytes for one (rows, cols) slab of `dtype`, padded to Mosaic tiles."""
    it = jnp.dtype(dtype).itemsize
    sublane = 8 * max(1, 4 // it)          # 8 for f32/i32, 16 for bf16, 32 for i8
    r = -(-rows // sublane) * sublane
    c = -(-cols // 128) * 128
    return r * c * it


def _vmem_caps():
    """(budget_bytes, vmem_limit_bytes, two_cores) for the current chip gen."""
    try:
        cap = int(pltpu.get_tpu_info().vmem_capacity_bytes)
    except Exception:
        cap = 64 * 1024 * 1024             # conservative fallback
    # v7x has 64 MiB per TensorCore and 2 TCs/chip; v5e/v6e have 128 MiB, 1 TC.
    two_cores = cap <= 64 * 1024 * 1024
    vmem_limit = min(cap * 3 // 4, 96 * 1024 * 1024)   # 48 MiB (v7x) / 96 MiB
    budget = vmem_limit * 2 // 3                        # headroom for compiler scratch
    return budget, vmem_limit, two_cores


def _choose_tiling(BH, per_bh_bytes, budget_bytes, two_cores):
    """Pick TB (heads per step) near the VMEM cap; BH need not divide TB."""
    cap = max(1, budget_bytes // max(per_bh_bytes, 1))
    if two_cores and BH >= 2:
        # Both TensorCores should get work: at least 2 steps, even step count.
        tb = max(1, min(cap, -(-BH // 2)))
        steps = -(-BH // tb)
        if steps % 2:
            steps += 1
    else:
        # Single TC: biggest block that fits; do not force extra steps
        # (each step costs ~0.35 us of pipeline overhead).
        tb = max(1, min(cap, BH))
        steps = -(-BH // tb)
    return tb, steps


# ---------------------------------------------------------------------------
# Forward wrapper (matches LogTrans.forward(Q, K, V, attn_mask))
# ---------------------------------------------------------------------------
def logtrans_forward(Q, K, V, attn_mask, d_k):
    """Returns (context, None, attn) with the same semantics as the reference."""
    B, H, Lq, D = Q.shape
    Lk = K.shape[2]
    log_l_k = int(math.log2(Lk))
    if log_l_k < 1:
        raise ValueError("LogTrans requires Lk >= 2 (log-sparse index set is empty).")
    inds_list = [Lk - 2 ** (log_l_k - i) for i in range(log_l_k)]
    nk = len(inds_list)
    inds = jnp.asarray(inds_list, dtype=jnp.int32)

    # Log-sparse gather along the key/value sequence axis (XLA side).
    K_sel = jnp.take(K, inds, axis=2)          # (B, H, nk, D)
    V_sel = jnp.take(V, inds, axis=2)          # (B, H, nk, D)

    BH = B * H
    q2 = Q.reshape(BH, Lq, D)
    k2 = K_sel.reshape(BH, nk, D)

    attn_dtype = jnp.promote_types(Q.dtype, K.dtype)
    ctx_dtype = jnp.promote_types(attn_dtype, V.dtype)
    has_mask = attn_mask is not None
    transposed = Lq >= 128                      # lane-dense attn layout
    score_rc = (nk, Lq) if transposed else (Lq, nk)

    # Per-head VMEM footprint: double-buffered I/O blocks + f32 temporaries
    # (scores, exp, pre-cast attn, mask-bit unpack) which Mosaic allocates on
    # top of the pipelined blocks.
    budget, vmem_limit, two_cores = _vmem_caps()
    mask_rc = (1, Lq) if transposed else (Lq, 1)
    per_bh = 2 * (
        _padded_vmem_bytes(Lq, D, q2.dtype)
        + _padded_vmem_bytes(nk, D, k2.dtype)
        + _padded_vmem_bytes(score_rc[0], score_rc[1], attn_dtype)
        + (_padded_vmem_bytes(mask_rc[0], mask_rc[1], jnp.int32) if has_mask else 0)
    ) + 4 * _padded_vmem_bytes(score_rc[0], score_rc[1], jnp.float32)

    TB, steps = _choose_tiling(BH, per_bh, budget, two_cores)
    BHp = TB * steps

    def pad_bh(x):
        if BHp == BH:
            return x
        pad = [(0, BHp - BH)] + [(0, 0)] * (x.ndim - 1)
        return jnp.pad(x, pad)

    q2 = pad_bh(q2)
    k2 = pad_bh(k2)

    scale = 1.0 / math.sqrt(d_k)
    in_arrays = [q2, k2]
    in_specs = [
        pl.BlockSpec((TB, Lq, D), lambda i: (i, 0, 0)),
        pl.BlockSpec((TB, nk, D), lambda i: (i, 0, 0)),
    ]
    if has_mask:
        # Bit-pack the nk mask booleans into one int32 per (head, q) row:
        # nk x fewer HBM/DMA bytes than an int8 (BH, Lq, nk) slab.
        mask_sel = (jnp.take(attn_mask, inds, axis=3) != 0).astype(jnp.int32)
        shifts = jnp.arange(nk, dtype=jnp.int32)
        packed = jnp.sum(mask_sel << shifts, axis=-1).reshape(BH, Lq)   # int32
        if transposed:
            m2 = packed.reshape(BH, 1, Lq)
            m_block = (TB, 1, Lq)
        else:
            m2 = packed.reshape(BH, Lq, 1)
            m_block = (TB, Lq, 1)
        m2 = pad_bh(m2)
        in_arrays.append(m2)
        in_specs.append(pl.BlockSpec(m_block, lambda i: (i, 0, 0)))
        kernel = functools.partial(_logtrans_kernel_masked,
                                   scale=scale, transposed=transposed)
    else:
        kernel = functools.partial(_logtrans_kernel_nomask,
                                   scale=scale, transposed=transposed)

    attn_shape = (BHp, nk, Lq) if transposed else (BHp, Lq, nk)
    attn_block = (TB, nk, Lq) if transposed else (TB, Lq, nk)

    attn_flat = pl.pallas_call(
        kernel,
        out_shape=jax.ShapeDtypeStruct(attn_shape, attn_dtype),
        grid=(steps,),
        in_specs=in_specs,
        out_specs=pl.BlockSpec(attn_block, lambda i: (i, 0, 0)),
        compiler_params=pltpu.CompilerParams(
            dimension_semantics=("parallel",),   # shard head groups across TCs
            vmem_limit_bytes=int(vmem_limit),
        ),
    )(*in_arrays)

    attn_flat = attn_flat[:BH]
    if transposed:
        attn = jnp.transpose(attn_flat, (0, 2, 1)).reshape(B, H, Lq, nk)
    else:
        attn = attn_flat.reshape(B, H, Lq, nk)

    # context = einsum('bhqk,bhvd->bhqd', attn, V_sel): k and v are independent
    # summed indices, so it is (sum_k attn) (outer) (sum_v V_sel).  Assembled
    # here (cheap rank-1 product) instead of writing Lq identical rows per head
    # from the kernel.
    rowsum = jnp.sum(attn, axis=-1, keepdims=True).astype(ctx_dtype)   # (B,H,Lq,1)
    vsum = jnp.sum(V_sel, axis=2, keepdims=True).astype(ctx_dtype)     # (B,H,1,D)
    context = rowsum * vsum                                            # (B,H,Lq,D)
    return context, None, attn


# ---------------------------------------------------------------------------
# Self-test
# ---------------------------------------------------------------------------
def _reference(Q, K, V, attn_mask, d_k):
    Lk = K.shape[2]
    log_l_k = int(math.log2(Lk))
    inds = jnp.asarray([Lk - 2 ** (log_l_k - i) for i in range(log_l_k)])
    K_sel = K[:, :, inds, :]
    V_sel = V[:, :, inds, :]
    scores = jnp.einsum("bhqd,bhkd->bhqk", Q, K_sel) / math.sqrt(d_k)
    if attn_mask is not None:
        scores = jnp.where(attn_mask[:, :, :, inds] != 0, -1.0e9, scores)
    a = jax.nn.softmax(scores, axis=-1)
    c = jnp.einsum("bhqk,bhvd->bhqd", a, V_sel)   # distinct k/v indices!
    return c, a


if __name__ == "__main__":
    key = jax.random.PRNGKey(0)

    # --- Case 1: small shapes (standard layout, Lq < 128), with & without mask
    B, H, Lq, Lk, d_k = 2, 2, 8, 16, 32
    kq, kk, kv, km = jax.random.split(key, 4)
    Q = jax.random.normal(kq, (B, H, Lq, d_k), dtype=jnp.float32)
    K = jax.random.normal(kk, (B, H, Lk, d_k), dtype=jnp.float32)
    V = jax.random.normal(kv, (B, H, Lk, d_k), dtype=jnp.float32)
    attn_mask = jax.random.bernoulli(km, p=0.25, shape=(B, H, Lq, Lk))

    ctx, _none, attn = logtrans_forward(Q, K, V, attn_mask, d_k)
    jax.block_until_ready((ctx, attn))
    ctx_nm, _nm, attn_nm = logtrans_forward(Q, K, V, None, d_k)
    jax.block_until_ready((ctx_nm, attn_nm))

    ctx_ref, attn_ref = _reference(Q, K, V, attn_mask, d_k)
    ctx_ref_nm, attn_ref_nm = _reference(Q, K, V, None, d_k)

    assert jnp.allclose(attn, attn_ref, atol=5e-3, rtol=5e-3), "attn mismatch"
    assert jnp.allclose(ctx, ctx_ref, atol=5e-3, rtol=5e-3), "context mismatch"
    assert jnp.allclose(attn_nm, attn_ref_nm, atol=5e-3, rtol=5e-3), "attn (no mask) mismatch"
    assert jnp.allclose(ctx_nm, ctx_ref_nm, atol=5e-3, rtol=5e-3), "context (no mask) mismatch"

    # --- Case 2: Lq >= 128 exercises the lane-dense (transposed) path
    B2, H2, Lq2, Lk2, d_k2 = 1, 2, 128, 64, 32
    kq2, kk2, kv2, km2 = jax.random.split(jax.random.PRNGKey(1), 4)
    Q2 = jax.random.normal(kq2, (B2, H2, Lq2, d_k2), dtype=jnp.float32)
    K2 = jax.random.normal(kk2, (B2, H2, Lk2, d_k2), dtype=jnp.float32)
    V2 = jax.random.normal(kv2, (B2, H2, Lk2, d_k2), dtype=jnp.float32)
    mask2 = jax.random.bernoulli(km2, p=0.25, shape=(B2, H2, Lq2, Lk2))

    ctx2, _n2, attn2 = logtrans_forward(Q2, K2, V2, mask2, d_k2)
    jax.block_until_ready((ctx2, attn2))
    ctx2_ref, attn2_ref = _reference(Q2, K2, V2, mask2, d_k2)
    assert jnp.allclose(attn2, attn2_ref, atol=5e-3, rtol=5e-3), "attn (lane-dense) mismatch"
    assert jnp.allclose(ctx2, ctx2_ref, atol=5e-3, rtol=5e-3), "context (lane-dense) mismatch"

    print("KERNEL_OK")
</pallas_src>

<mosaic_0001>
module attributes {stable_mosaic.version = 11 : i64} {
  func.func @_logtrans_kernel_masked(%arg0: i32, %arg1: memref<2x8x32xf32, #tpu.memory_space<vmem>>, %arg2: memref<2x4x32xf32, #tpu.memory_space<vmem>>, %arg3: memref<2x8x1xi32, #tpu.memory_space<vmem>>, %arg4: memref<2x8x4xf32, #tpu.memory_space<vmem>>) attributes {dimension_semantics = [#tpu.dimension_semantics<parallel>], iteration_bounds = array<i64: 2>, scalar_prefetch = 0 : i64, scratch_operands = 0 : i64, tpu.core_type = #tpu.core_type<tc>, window_params = [{transform_indices = @transform_0, window_bounds = array<i64: 2, 8, 32>}, {transform_indices = @transform_1, window_bounds = array<i64: 2, 4, 32>}, {transform_indices = @transform_2, window_bounds = array<i64: 2, 8, 1>}, {transform_indices = @transform_3, window_bounds = array<i64: 2, 8, 4>}]} {
    %c0 = arith.constant 0 : index
    %c0_0 = arith.constant 0 : index
    %c0_1 = arith.constant 0 : index
    %0 = vector.load %arg1[%c0, %c0_0, %c0_1] : memref<2x8x32xf32, #tpu.memory_space<vmem>>, vector<2x8x32xf32>
    %c0_2 = arith.constant 0 : index
    %c0_3 = arith.constant 0 : index
    %c0_4 = arith.constant 0 : index
    %1 = vector.load %arg2[%c0_2, %c0_3, %c0_4] : memref<2x4x32xf32, #tpu.memory_space<vmem>>, vector<2x4x32xf32>
    %c0_5 = arith.constant 0 : index
    %c0_6 = arith.constant 0 : index
    %c0_7 = arith.constant 0 : index
    %2 = vector.load %arg3[%c0_5, %c0_6, %c0_7] : memref<2x8x1xi32, #tpu.memory_space<vmem>>, vector<2x8x1xi32>
    "tpu.trace_start"() <{level = 10 : i32, message = "bqd,bkd->bqk"}> : () -> ()
    %cst = arith.constant dense<0.000000e+00> : vector<2x8x4xf32>
    %3 = tpu.matmul %0, %1, %cst {dimension_numbers = #tpu.dot_dimension_numbers<[2], [2], [1], [1], [0, 0, 0, 1, 1, 1], [0], [0]>} : vector<2x8x32xf32>, vector<2x4x32xf32>, vector<2x8x4xf32> -> vector<2x8x4xf32>
    "tpu.trace_stop"() : () -> ()
    %cst_8 = arith.constant 0.176776692 : f32
    %4 = vector.broadcast %cst_8 : f32 to vector<2x8x4xf32>
    %5 = arith.mulf %3, %4 : vector<2x8x4xf32>
    %6 = tpu.iota {dimensions = array<i32: 2>} : vector<2x8x4xi32>
    %7 = vector.broadcast %2 : vector<2x8x1xi32> to vector<2x8x4xi32>
    %8 = arith.shrsi %7, %6 : vector<2x8x4xi32>
    %c1_i32 = arith.constant 1 : i32
    %9 = vector.broadcast %c1_i32 : i32 to vector<2x8x4xi32>
    %10 = arith.andi %8, %9 : vector<2x8x4xi32>
    %c0_i32 = arith.constant 0 : i32
    %11 = vector.broadcast %c0_i32 : i32 to vector<2x8x4xi32>
    %12 = arith.cmpi ne, %10, %11 : vector<2x8x4xi32>
    %cst_9 = arith.constant -1.000000e+09 : f32
    %13 = vector.broadcast %cst_9 : f32 to vector<2x8x4xf32>
    %14 = arith.select %12, %13, %5 : vector<2x8x4xi1>, vector<2x8x4xf32>
    %cst_10 = arith.constant dense<0xFF800000> : vector<2x8xf32>
    %15 = vector.multi_reduction <maximumf>, %14, %cst_10 [2] : vector<2x8x4xf32> to vector<2x8xf32>
    %16 = vector.shape_cast %15 : vector<2x8xf32> to vector<2x8x1xf32>
    %17 = vector.broadcast %16 : vector<2x8x1xf32> to vector<2x8x4xf32>
    %18 = arith.subf %14, %17 : vector<2x8x4xf32>
    %19 = math.exp %18 : vector<2x8x4xf32>
    %cst_11 = arith.constant dense<0.000000e+00> : vector<2x8xf32>
    %20 = vector.multi_reduction <add>, %19, %cst_11 [2] : vector<2x8x4xf32> to vector<2x8xf32>
    %21 = vector.shape_cast %20 : vector<2x8xf32> to vector<2x8x1xf32>
    %22 = tpu.reciprocal %21 {approx = true} : vector<2x8x1xf32> -> vector<2x8x1xf32>
    %23 = vector.broadcast %22 : vector<2x8x1xf32> to vector<2x8x4xf32>
    %24 = arith.mulf %19, %23 : vector<2x8x4xf32>
    %c0_12 = arith.constant 0 : index
    %c0_13 = arith.constant 0 : index
    %c0_14 = arith.constant 0 : index
    %25 = vector.load %arg4[%c0_12, %c0_13, %c0_14] : memref<2x8x4xf32, #tpu.memory_space<vmem>>, vector<2x8x4xf32>
    tpu.vector_store %arg4[%c0_12, %c0_13, %c0_14], %24 {strides = array<i32>} : memref<2x8x4xf32, #tpu.memory_space<vmem>>, vector<2x8x4xf32>,
    return
  }
  func.func @transform_0(%arg0: i32) -> (i32, i32, i32) {
    %c0_i32 = arith.constant 0 : i32
    %c0_i32_0 = arith.constant 0 : i32
    %c0_i32_1 = arith.constant 0 : i32
    return %arg0, %c0_i32, %c0_i32_0 : i32, i32, i32
  }
  func.func @transform_1(%arg0: i32) -> (i32, i32, i32) {
    %c0_i32 = arith.constant 0 : i32
    %c0_i32_0 = arith.constant 0 : i32
    %c0_i32_1 = arith.constant 0 : i32
    return %arg0, %c0_i32, %c0_i32_0 : i32, i32, i32
  }
  func.func @transform_2(%arg0: i32) -> (i32, i32, i32) {
    %c0_i32 = arith.constant 0 : i32
    %c0_i32_0 = arith.constant 0 : i32
    %c0_i32_1 = arith.constant 0 : i32
    return %arg0, %c0_i32, %c0_i32_0 : i32, i32, i32
  }
  func.func @transform_3(%arg0: i32) -> (i32, i32, i32) {
    %c0_i32 = arith.constant 0 : i32
    %c0_i32_0 = arith.constant 0 : i32
    %c0_i32_1 = arith.constant 0 : i32
    return %arg0, %c0_i32, %c0_i32_0 : i32, i32, i32
  }
}

</mosaic_0001>

<llo_original>
// kernel: tpu_custom_call.1
$region0: #{tpu_custom_call.1}
  #allocation0 [shape = 'u32[]', space=smem, size = 0x4, offset = 0x4, fixed_abs, tag = 'smem constant byte address 0x4 - core index']
  #allocation1 [shape = 'u32[144,128]{1,0:T(1,128)}', space=vmem, size = 0x12000, scoped, tag = 'internal scratch']
  %s0 = inlined_call_operand.vmem [shape: f32[4,8,32], index: 0, kind: input, shape index: {}]
  %s1 = inlined_call_operand.hbm [shape: f32[4,4,32], index: 1, kind: input, shape index: {}]
  %s2 = inlined_call_operand.vmem [shape: s32[4,8,1], index: 2, kind: input, shape index: {}]
  %s3 = inlined_call_operand.vmem [shape: f32[4,8,4], index: 3, kind: output, shape index: {}]
  %s4 = sld [smem:[#allocation0]]
  $region49: #{tpu_custom_call.1} parent=0
    _
  %s6 = ssub.s32 1, %s4
  %s7 = scalar_select 0, %s6, %s4
  $region1: #{tpu_custom_call.1} parent=0
    #allocation2 [shape = 'u8[8192]{0}', space=vmem, size = 0x2000, scoped, tag = 'input window, operand 1']
    #allocation3 [shape = 's32[2]{0}', space=sflag, size = 0x8, scoped, tag = 'scoped memory for tpu_custom_call.1']
    %8 = vsyncpa [#allocation3], 0
    %s9 = scalar_lea.sflag [#allocation3], 1
    %10 = vsyncpa %s9, 0
    loop: start=0, step=1, limit=4
    $region2: #{tpu_custom_call.1} parent=1 // loop_pre_header
      _
    $region3: #{tpu_custom_call.1} parent=1 // loop_header
      %s12 = sphi 0, %s16
      %p13 = scmp.ge.s32.totalorder %s12, 4
      %s22 = sphi 0, %s24
      %s25 = sphi 0, %s22
      %s26 = sphi 0, %s25
      %s42 = sphi 0, %s26
      %s48 = sphi 0, %s50
      %s51 = sphi 0, %s48
      %s52 = sphi 0, %s51
      %s68 = sphi 0, %s52
      %s74 = sphi 0, %s76
      %s77 = sphi 0, %s74
      %s78 = sphi 0, %s77
      %s94 = sphi 0, %s78
      %s100 = sphi 0, %s102
      %s103 = sphi 0, %s100
      %s104 = sphi 0, %s103
      %s120 = sphi 0, %s104
    $region4: #{tpu_custom_call.1} parent=1 // loop_header_branch
      %15 = sbr.rel (%p13) target = $region8
    $region5: #{tpu_custom_call.1} parent=1 // loop_body
      %s17 = ssub.s32 %s12, 1
      %s18 = ssub.s32 %s12, 2
      %s19 = sadd.s32 %s12, 1
      %s20 = ssub.s32 %s12, %s19
      %p21 = scmp.eq.s32.totalorder %s20, 0
      %s23 = sadd.s32 %s22, 1
      %s24 = scalar_select %p21, %s22, %s23
      %p27 = pneg %p21
      %p28 = scmp.eq.s32.totalorder %s12, 1
      %p29 = por %p27, %p28
      %p30 = scmp.ne.s32.totalorder %s22, %s25
      %p31 = scmp.eq.s32.totalorder %s12, 0
      %p32 = por %p30, %p31
      %p33 = scmp.ne.s32.totalorder %s22, %s25
      %p34 = scmp.eq.s32.totalorder %s17, 1
      %p35 = por %p33, %p34
      %p36 = scmp.ne.s32.totalorder %s25, %s26
      %p37 = scmp.eq.s32.totalorder %s17, 0
      %p38 = por %p36, %p37
      %p39 = scmp.ne.s32.totalorder %s25, %s26
      %p40 = scmp.eq.s32.totalorder %s18, 1
      %p41 = por %p39, %p40
      %p43 = scmp.ne.s32.totalorder %s26, %s42
      %p44 = scmp.eq.s32.totalorder %s18, 0
      %p45 = por %p43, %p44
      %s46 = ssub.s32 %s12, %s19
      %p47 = scmp.eq.s32.totalorder %s46, 0
      %s49 = sadd.s32 %s48, 1
      %s50 = scalar_select %p47, %s48, %s49
      %p53 = pneg %p47
      %p54 = scmp.eq.s32.totalorder %s12, 1
      %p55 = por %p53, %p54
      %p56 = scmp.ne.s32.totalorder %s48, %s51
      %p57 = scmp.eq.s32.totalorder %s12, 0
      %p58 = por %p56, %p57
      %p59 = scmp.ne.s32.totalorder %s48, %s51
      %p60 = scmp.eq.s32.totalorder %s17, 1
      %p61 = por %p59, %p60
      %p62 = scmp.ne.s32.totalorder %s51, %s52
      %p63 = scmp.eq.s32.totalorder %s17, 0
      %p64 = por %p62, %p63
      %p65 = scmp.ne.s32.totalorder %s51, %s52
      %p66 = scmp.eq.s32.totalorder %s18, 1
      %p67 = por %p65, %p66
      %p69 = scmp.ne.s32.totalorder %s52, %s68
      %p70 = scmp.eq.s32.totalorder %s18, 0
      %p71 = por %p69, %p70
      %s72 = ssub.s32 %s12, %s19
      %p73 = scmp.eq.s32.totalorder %s72, 0
      %s75 = sadd.s32 %s74, 1
      %s76 = scalar_select %p73, %s74, %s75
      %p79 = pneg %p73
      %p80 = scmp.eq.s32.totalorder %s12, 1
      %p81 = por %p79, %p80
      %p82 = scmp.ne.s32.totalorder %s74, %s77
      %p83 = scmp.eq.s32.totalorder %s12, 0
      %p84 = por %p82, %p83
      %p85 = scmp.ne.s32.totalorder %s74, %s77
      %p86 = scmp.eq.s32.totalorder %s17, 1
      %p87 = por %p85, %p86
      %p88 = scmp.ne.s32.totalorder %s77, %s78
      %p89 = scmp.eq.s32.totalorder %s17, 0
      %p90 = por %p88, %p89
      %p91 = scmp.ne.s32.totalorder %s77, %s78
      %p92 = scmp.eq.s32.totalorder %s18, 1
      %p93 = por %p91, %p92
      %p95 = scmp.ne.s32.totalorder %s78, %s94
      %p96 = scmp.eq.s32.totalorder %s18, 0
      %p97 = por %p95, %p96
      %s98 = ssub.s32 %s12, %s19
      %p99 = scmp.eq.s32.totalorder %s98, 0
      %s101 = sadd.s32 %s100, 1
      %s102 = scalar_select %p99, %s100, %s101
      %p105 = pneg %p99
      %p106 = scmp.eq.s32.totalorder %s12, 1
      %p107 = por %p105, %p106
      %p108 = scmp.ne.s32.totalorder %s100, %s103
      %p109 = scmp.eq.s32.totalorder %s12, 0
      %p110 = por %p108, %p109
      %p111 = scmp.ne.s32.totalorder %s100, %s103
      %p112 = scmp.eq.s32.totalorder %s17, 1
      %p113 = por %p111, %p112
      %p114 = scmp.ne.s32.totalorder %s103, %s104
      %p115 = scmp.eq.s32.totalorder %s17, 0
      %p116 = por %p114, %p115
      %p117 = scmp.ne.s32.totalorder %s103, %s104
      %p118 = scmp.eq.s32.totalorder %s18, 1
      %p119 = por %p117, %p118
      %p121 = scmp.ne.s32.totalorder %s104, %s120
      %p122 = scmp.eq.s32.totalorder %s18, 0
      %p123 = por %p121, %p122
      %p124 = scmp.le.s32.totalorder 1, %s12
      %p125 = scmp.lt.s32.totalorder %s12, 3
      %p126 = pnand %p124, %p125
      %p127 = pneg %p126
      // Predicated region
      $region9: #{tpu_custom_call.1} parent=5 // pred_check
        _
      $region10: #{tpu_custom_call.1} parent=5 // pred_check_branch
        %129 = sbr.rel (%p126) target = $region12
      $region11: #{tpu_custom_call.1} parent=5 // pred_region
        %s130 = ssub.s32 %s12, 1
      $region12: #{tpu_custom_call.1} parent=5 // pred_fallthru
        _
      %p131 = scmp.lt.s32.totalorder %s12, 2
      // Predicated region
      $region13: #{tpu_custom_call.1} parent=5 // pred_check
        %p132 = pneg %p131
      $region14: #{tpu_custom_call.1} parent=5 // pred_check_branch
        %134 = sbr.rel (%p132) target = $region16
      $region15: #{tpu_custom_call.1} parent=5 // pred_region
        // Predicated region
        $region17: #{tpu_custom_call.1} parent=15 // pred_check
          %p135 = pneg %p32
        $region18: #{tpu_custom_call.1} parent=15 // pred_check_branch
          %137 = sbr.rel (%p135) target = $region20
        $region19: #{tpu_custom_call.1} parent=15 // pred_region
          %s138 = smul.u32 2, %s12
          %p139 = scmp.lt.s32.totalorder %s138, 3
          %s140 = scalar_select %p139, %s138, 3
          %s141 = smul.addr %s140, 8
          %s142 = scalar_lea.vmem %s0, %s141
          %s143 = smul.u32 2, %s12
        $region20: #{tpu_custom_call.1} parent=15 // pred_fallthru
          _
        // Predicated region
        $region21: #{tpu_custom_call.1} parent=15 // pred_check
          %p144 = pneg %p58
        $region22: #{tpu_custom_call.1} parent=15 // pred_check_branch
          %146 = sbr.rel (%p144) target = $region24
        $region23: #{tpu_custom_call.1} parent=15 // pred_region
          %s147 = sand.u32 %s48, 1
          %s148 = scalar_lea.sflag [#allocation3], %s147
          %s149 = sand.u32 %s48, 1
          %s150 = smul.addr %s149, 8
          %s151 = scalar_lea.vmem [#allocation2], %s150
          %s152 = smul.u32 2, %s12
          %s154 = ssub.s32 128, 128
          %155 = vsyncadd %s148, %s154
          %s156 = smul.addr %s152, 64
          %s157 = scalar_lea.hbm %s1, %s156
          %s158 = sshll.u32 %s151, 4
          %s159 = int_to_ptr.vmem [resolvable:$true] %s158
          %164 = dma.hbm_to_vmem [thread:$0]  %s157, 128, %s159, %s148, 64, 64, 4
        $region24: #{tpu_custom_call.1} parent=15 // pred_fallthru
          _
        // Predicated region
        $region25: #{tpu_custom_call.1} parent=15 // pred_check
          %p165 = pneg %p84
        $region26: #{tpu_custom_call.1} parent=15 // pred_check_branch
          %167 = sbr.rel (%p165) target = $region28
        $region27: #{tpu_custom_call.1} parent=15 // pred_region
          %s168 = smul.u32 2, %s12
          %p169 = scmp.lt.s32.totalorder %s168, 3
          %s170 = scalar_select %p169, %s168, 3
          %s171 = smul.addr %s170, 8
          %s172 = scalar_lea.vmem %s2, %s171
          %s173 = smul.u32 2, %s12
        $region28: #{tpu_custom_call.1} parent=15 // pred_fallthru
          _
      $region16: #{tpu_custom_call.1} parent=5 // pred_fallthru
        _
      %p174 = scmp.le.s32.totalorder 1, %s12
      %p175 = scmp.lt.s32.totalorder %s12, 3
      %p176 = pnand %p174, %p175
      %p177 = pneg %p176
      // Predicated region
      $region29: #{tpu_custom_call.1} parent=5 // pred_check
        _
      $region30: #{tpu_custom_call.1} parent=5 // pred_check_branch
        %179 = sbr.rel (%p176) target = $region32
      $region31: #{tpu_custom_call.1} parent=5 // pred_region
        %s180 = ssub.s32 %s12, 1
        %s181 = sand.u32 %s51, 1
        %s182 = scalar_lea.sflag [#allocation3], %s181
        %s183 = sand.u32 %s51, 1
        %s184 = smul.addr %s183, 8
        %s185 = scalar_lea.vmem [#allocation2], %s184
        // Predicated region
        $region33: #{tpu_custom_call.1} parent=31 // pred_check
          %p186 = pneg %p64
        $region34: #{tpu_custom_call.1} parent=31 // pred_check_branch
          %188 = sbr.rel (%p186) target = $region36
        $region35: #{tpu_custom_call.1} parent=31 // pred_region
          %189 = dma.done %s182, 128
        $region36: #{tpu_custom_call.1} parent=31 // pred_fallthru
          _
        %s190 = smul.u32 2, %s17
        %p191 = scmp.lt.s32.totalorder %s190, 3
        %s192 = scalar_select %p191, %s190, 3
        %s193 = smul.addr %s192, 8
        %s194 = scalar_lea.vmem %s0, %s193
        %p195 = pneg %p38
        %p196 = pneg %p35
        %s197 = sand.u32 %s51, 1
        %s198 = scalar_lea.sflag [#allocation3], %s197
        %s199 = sand.u32 %s51, 1
        %s200 = smul.addr %s199, 8
        %s201 = scalar_lea.vmem [#allocation2], %s200
        %p202 = pneg %p64
        %p203 = pneg %p61
        %s204 = smul.u32 2, %s17
        %p205 = scmp.lt.s32.totalorder %s204, 3
        %s206 = scalar_select %p205, %s204, 3
        %s207 = smul.addr %s206, 8
        %s208 = scalar_lea.vmem %s2, %s207
        %p209 = pneg %p90
        %p210 = pneg %p87
        %p211 = pneg %p116
        %p212 = pneg %p113
        %s213 = smul.u32 2, %s17
        %p214 = scmp.lt.s32.totalorder %s213, 3
        %s215 = scalar_select %p214, %s213, 3
        %s216 = smul.addr %s215, 8
        %s217 = scalar_lea.vmem %s3, %s216
        %s218 = smul.u32 2, %s17
        %p219 = scmp.lt.s32.totalorder %s218, 3
        %s220 = scalar_select %p219, %s218, 3
        %s221 = smul.addr %s220, 8
        %s222 = scalar_lea.vmem %s0, %s221
        %s223 = smul.u32 2, %s17
        %s224 = smul.u32 2, %s17
        %s225 = smul.u32 2, %s17
        %p226 = scmp.lt.s32.totalorder %s225, 3
        %s227 = scalar_select %p226, %s225, 3
        %s228 = smul.addr %s227, 8
        %s229 = scalar_lea.vmem %s2, %s228
        %s230 = smul.u32 2, %s17
        %s231 = smul.u32 2, %s17
        %p232 = scmp.lt.s32.totalorder %s231, 3
        %s233 = scalar_select %p232, %s231, 3
        %s234 = smul.addr %s233, 8
        %s235 = scalar_lea.vmem %s3, %s234
        %s236 = smul.u32 2, %s17
        %v237 = vld [vmem:[%s222] sm:$0xff]
        %v238 = vld [vmem:[%s222 + $0x8] sm:$0xff]
        %v239 = vld [vmem:[%s185] sm:$0xf]
        %v240 = vld [vmem:[%s185 + $0x4] sm:$0xf]
        %v241 = vld [vmem:[%s229] sm:$0xff]
        %v242 = vld [vmem:[%s229 + $0x8] sm:$0xff]
        %vm243 = vcmask 261120
        %v245 = vsel %vm243, %v237, 0
        %v248 = vsel %vm243, %v239, 0
        %250 = vmatprep.subr.mxu0 0.0
        %251 = vmatpush1.xpose.msra.mxu0 %v248
        %252 = vmatprep.subr.mxu0 0.0
        %253 = vmatpush1.xpose.msra.mxu0 0.0
        %254 = vmatprep.subr.mxu0 0.0
        %255 = vmatpush1.xpose.msra.mxu0 0.0
        %256 = vmatprep.subr.mxu0 0.0
        %257 = vmatpush1.xpose.msra.mxu0 0.0
        %258 = vmatprep.subr.mxu0 0.0
        %259 = vmatpush1.xpose.msra.mxu0 0.0
        %260 = vmatprep.subr.mxu0 0.0
        %261 = vmatpush1.xpose.msra.mxu0 0.0
        %262 = vmatprep.subr.mxu0 0.0
        %263 = vmatpush1.xpose.msra.mxu0 0.0
        %264 = vmatprep.subr.mxu0 0.0
        %265 = vmatpush1.xpose.msra.mxu0 0.0
        %266 = vmatprep.subr.mxu0 0.0
        %267 = vmatpush1.xpose.msra.mxu0 0.0
        %268 = vmatprep.subr.mxu0 0.0
        %269 = vmatpush1.xpose.msra.mxu0 0.0
        %270 = vmatprep.subr.mxu0 0.0
        %271 = vmatpush1.xpose.msra.mxu0 0.0
        %272 = vmatprep.subr.mxu0 0.0
        %273 = vmatpush1.xpose.msra.mxu0 0.0
        %274 = vmatprep.subr.mxu0 0.0
        %275 = vmatpush1.xpose.msra.mxu0 0.0
        %276 = vmatprep.subr.mxu0 0.0
        %277 = vmatpush1.xpose.msra.mxu0 0.0
        %278 = vmatprep.subr.mxu0 0.0
        %279 = vmatpush1.xpose.msra.mxu0 0.0
        %280 = vmatprep.subr.mxu0 0.0
        %281 = vmatpush1.xpose.msra.mxu0 0.0
        %282 = vmatprep.subr.mxu0 0.0
        %283 = vmatpush1.xpose.msra.mxu0 0.0
        %284 = vmatprep.subr.mxu0 0.0
        %285 = vmatpush1.xpose.msra.mxu0 0.0
        %286 = vmatprep.subr.mxu0 0.0
        %287 = vmatpush1.xpose.msra.mxu0 0.0
        %288 = vmatprep.subr.mxu0 0.0
        %289 = vmatpush1.xpose.msra.mxu0 0.0
        %290 = vmatprep.subr.mxu0 0.0
        %291 = vmatpush1.xpose.msra.mxu0 0.0
        %292 = vmatprep.subr.mxu0 0.0
        %293 = vmatpush1.xpose.msra.mxu0 0.0
        %294 = vmatprep.subr.mxu0 0.0
        %295 = vmatpush1.xpose.msra.mxu0 0.0
        %296 = vmatprep.subr.mxu0 0.0
        %297 = vmatpush1.xpose.msra.mxu0 0.0
        %298 = vmatprep.subr.mxu0 0.0
        %299 = vmatpush1.xpose.msra.mxu0 0.0
        %300 = vmatprep.subr.mxu0 0.0
        %301 = vmatpush1.xpose.msra.mxu0 0.0
        %302 = vmatprep.subr.mxu0 0.0
        %303 = vmatpush1.xpose.msra.mxu0 0.0
        %304 = vmatprep.subr.mxu0 0.0
        %305 = vmatpush1.xpose.msra.mxu0 0.0
        %306 = vmatprep.subr.mxu0 0.0
        %307 = vmatpush1.xpose.msra.mxu0 0.0
        %308 = vmatprep.subr.mxu0 0.0
        %309 = vmatpush1.xpose.msra.mxu0 0.0
        %310 = vmatprep.subr.mxu0 0.0
        %311 = vmatpush1.xpose.msra.mxu0 0.0
        %312 = vmatprep.subr.mxu0 0.0
        %313 = vmatpush1.xpose.msra.mxu0 0.0
        %314 = vmatprep.mubr.f32.mxu0 0.0
        %315 = vmatmul.mubr.f32.gmra.mrb[0].mxu0 %v245
        %v316 = vpop.f32.mrb[0].mxu0
        %v317 = vadd.f32 0.0, %v316
        %v318 = vpop.f32.mrb[0].mxu0
        %319 = vdwg.mxu0
        %v321 = vsel %vm243, %v238, 0
        %v324 = vsel %vm243, %v240, 0
        %326 = vmatprep.subr.mxu0 0.0
        %327 = vmatpush1.xpose.msra.mxu0 %v324
        %328 = vmatprep.subr.mxu0 0.0
        %329 = vmatpush1.xpose.msra.mxu0 0.0
        %330 = vmatprep.subr.mxu0 0.0
        %331 = vmatpush1.xpose.msra.mxu0 0.0
        %332 = vmatprep.subr.mxu0 0.0
        %333 = vmatpush1.xpose.msra.mxu0 0.0
        %334 = vmatprep.subr.mxu0 0.0
        %335 = vmatpush1.xpose.msra.mxu0 0.0
        %336 = vmatprep.subr.mxu0 0.0
        %337 = vmatpush1.xpose.msra.mxu0 0.0
        %338 = vmatprep.subr.mxu0 0.0
        %339 = vmatpush1.xpose.msra.mxu0 0.0
        %340 = vmatprep.subr.mxu0 0.0
        %341 = vmatpush1.xpose.msra.mxu0 0.0
        %342 = vmatprep.subr.mxu0 0.0
        %343 = vmatpush1.xpose.msra.mxu0 0.0
        %344 = vmatprep.subr.mxu0 0.0
        %345 = vmatpush1.xpose.msra.mxu0 0.0
        %346 = vmatprep.subr.mxu0 0.0
        %347 = vmatpush1.xpose.msra.mxu0 0.0
        %348 = vmatprep.subr.mxu0 0.0
        %349 = vmatpush1.xpose.msra.mxu0 0.0
        %350 = vmatprep.subr.mxu0 0.0
        %351 = vmatpush1.xpose.msra.mxu0 0.0
        %352 = vmatprep.subr.mxu0 0.0
        %353 = vmatpush1.xpose.msra.mxu0 0.0
        %354 = vmatprep.subr.mxu0 0.0
        %355 = vmatpush1.xpose.msra.mxu0 0.0
        %356 = vmatprep.subr.mxu0 0.0
        %357 = vmatpush1.xpose.msra.mxu0 0.0
        %358 = vmatprep.subr.mxu0 0.0
        %359 = vmatpush1.xpose.msra.mxu0 0.0
        %360 = vmatprep.subr.mxu0 0.0
        %361 = vmatpush1.xpose.msra.mxu0 0.0
        %362 = vmatprep.subr.mxu0 0.0
        %363 = vmatpush1.xpose.msra.mxu0 0.0
        %364 = vmatprep.subr.mxu0 0.0
        %365 = vmatpush1.xpose.msra.mxu0 0.0
        %366 = vmatprep.subr.mxu0 0.0
        %367 = vmatpush1.xpose.msra.mxu0 0.0
        %368 = vmatprep.subr.mxu0 0.0
        %369 = vmatpush1.xpose.msra.mxu0 0.0
        %370 = vmatprep.subr.mxu0 0.0
        %371 = vmatpush1.xpose.msra.mxu0 0.0
        %372 = vmatprep.subr.mxu0 0.0
        %373 = vmatpush1.xpose.msra.mxu0 0.0
        %374 = vmatprep.subr.mxu0 0.0
        %375 = vmatpush1.xpose.msra.mxu0 0.0
        %376 = vmatprep.subr.mxu0 0.0
        %377 = vmatpush1.xpose.msra.mxu0 0.0
        %378 = vmatprep.subr.mxu0 0.0
        %379 = vmatpush1.xpose.msra.mxu0 0.0
        %380 = vmatprep.subr.mxu0 0.0
        %381 = vmatpush1.xpose.msra.mxu0 0.0
        %382 = vmatprep.subr.mxu0 0.0
        %383 = vmatpush1.xpose.msra.mxu0 0.0
        %384 = vmatprep.subr.mxu0 0.0
        %385 = vmatpush1.xpose.msra.mxu0 0.0
        %386 = vmatprep.subr.mxu0 0.0
        %387 = vmatpush1.xpose.msra.mxu0 0.0
        %388 = vmatprep.subr.mxu0 0.0
        %389 = vmatpush1.xpose.msra.mxu0 0.0
        %390 = vmatprep.mubr.f32.mxu0 0.0
        %391 = vmatmul.mubr.f32.gmra.mrb[0].mxu0 %v321
        %v392 = vpop.f32.mrb[0].mxu0
        %v393 = vadd.f32 0.0, %v392
        %v394 = vpop.f32.mrb[0].mxu0
        %395 = vdwg.mxu0
        %v396 = vmul.f32 %v317, 0.17677669
        %v397 = vmul.f32 %v393, 0.17677669
        %v398 = vlaneseq
        %v399 = vand.u32 %v398, 127
        %400 = vset.pattern.permute.xlu0 0
        %401 = vperm.xlu0 %400, %v241
        %v402 = vpop.permute.xlu0 %401
        %403 = vset.pattern.permute.xlu0 0
        %404 = vperm.xlu0 %403, %v242
        %v405 = vpop.permute.xlu0 %404
        %v406 = vshra.s32 %v402, %v399
        %v407 = vshra.s32 %v405, %v399
        %v408 = vand.u32 %v406, 1
        %v409 = vand.u32 %v407, 1
        %vm410 = vcmp.ne.s32.totalorder %v408, 0
        %vm411 = vcmp.ne.s32.totalorder %v409, 0
        %v412 = vsel %vm410, -1e+09, %v396
        %v413 = vsel %vm411, -1e+09, %v397
        %vm414 = vcmask 31744
        %v415 = vsel %vm414, %v412, -inf
        %416 = vmax.xlane.f32.xlu0 %v415
        %v417 = vpop.xlane.xlu0 %416
        %v418 = vsel %vm414, %v413, -inf
        %419 = vmax.xlane.f32.xlu0 %v418
        %v420 = vpop.xlane.xlu0 %419
        %v421 = vsub.f32 %v412, %v417
        %v422 = vsub.f32 %v413, %v420
        %v423 = vmul.f32 %v421, 1.442695
        %v424 = vpow.pop %v423
        %v425 = vmul.f32 %v422, 1.442695
        %v426 = vpow.pop %v425
        %v427 = vsel %vm414, %v424, 0.0
        %428 = vadd.xlane.f32.xlu0 %v427
        %v429 = vpop.xlane.xlu0 %428
        %v430 = vsel %vm414, %v426, 0.0
        %431 = vadd.xlane.f32.xlu0 %v430
        %v432 = vpop.xlane.xlu0 %431
        %v433 = vrcp.pop %v429
        %v434 = vrcp.pop %v432
        %v435 = vmul.f32 %v424, %v433
        %v436 = vmul.f32 %v426, %v434
        %437 = vst.msk [vmem:[%s235] sm:$0xff] %vm414, %v435
        %438 = vst.msk [vmem:[%s235 + $0x8] sm:$0xff] %vm414, %v436
        %s439 = smul.u32 2, %s17
        %p440 = scmp.lt.s32.totalorder %s439, 3
        %s441 = scalar_select %p440, %s439, 3
        %s442 = smul.addr %s441, 8
        %s443 = scalar_lea.vmem %s3, %s442
        // Predicated region
        $region37: #{tpu_custom_call.1} parent=31 // pred_check
          %p444 = pneg %p113
        $region38: #{tpu_custom_call.1} parent=31 // pred_check_branch
          %446 = sbr.rel (%p444) target = $region40
        $region39: #{tpu_custom_call.1} parent=31 // pred_region
          %s447 = smul.u32 2, %s17
        $region40: #{tpu_custom_call.1} parent=31 // pred_fallthru
          _
      $region32: #{tpu_custom_call.1} parent=5 // pred_fallthru
        _
      %p448 = scmp.le.s32.totalorder 2, %s12
      // Predicated region
      $region41: #{tpu_custom_call.1} parent=5 // pred_check
        %p449 = pneg %p448
      $region42: #{tpu_custom_call.1} parent=5 // pred_check_branch
        %451 = sbr.rel (%p449) target = $region44
      $region43: #{tpu_custom_call.1} parent=5 // pred_region
        %s452 = ssub.s32 %s12, 2
        // Predicated region
        $region45: #{tpu_custom_call.1} parent=43 // pred_check
          %p453 = pneg %p119
        $region46: #{tpu_custom_call.1} parent=43 // pred_check_branch
          %455 = sbr.rel (%p453) target = $region48
        $region47: #{tpu_custom_call.1} parent=43 // pred_region
          %s456 = smul.u32 2, %s18
          %p457 = scmp.lt.s32.totalorder %s456, 3
          %s458 = scalar_select %p457, %s456, 3
          %s459 = smul.addr %s458, 8
          %s460 = scalar_lea.vmem %s3, %s459
        $region48: #{tpu_custom_call.1} parent=43 // pred_fallthru
          _
      $region44: #{tpu_custom_call.1} parent=5 // pred_fallthru
        _
    $region6: #{tpu_custom_call.1} parent=1 // loop_footer
      %s16 = sadd.s32 1, %s12
    $region7: #{tpu_custom_call.1} parent=1 // loop_footer_branch
      %11 = sbr.rel target = $region3
    $region8: #{tpu_custom_call.1} parent=1 // loop_exit
      _
    %461 = vsyncpa [#allocation3], 1
    %s462 = scalar_lea.sflag [#allocation3], 1
    %463 = vsyncpa %s462, 1

</llo_original>
